<compile_context>
chip_gen: v7x
topology: tpu7x:2x2x1
jax: 0.10.0
libtpu: 0.0.40
codegen_flags: <defaults>
</compile_context>

<pallas_src>
import jax
import jax.numpy as jnp
from jax.experimental import pallas as pl
from jax.experimental.pallas import tpu as pltpu


def _pick_lane_tile(hw):
    """Lane tile that divides HW exactly.

    If HW is a multiple of 128, pick the largest divisor of HW that is a multiple of
    128 and <= 1024 (e.g. 6400 -> 640, 256 -> 256).  Otherwise use a single
    full-extent last-dim block (valid: block dim == full array dim), which covers the
    typical small YOLO levels (400, 1600, or the toy 64/16) with zero padding.
    """
    if hw % 128 == 0:
        best = 128
        t = 256
        while t <= min(hw, 1024):
            if hw % t == 0:
                best = t
            t += 128
        return best
    return hw


def _detect_layer_kernel(x_ref, w_ref, consts_ref, gxy_ref, *out_refs):
    """1x1 conv (bf16 MXU, f32 acc) + fused YOLO decode on lane-dense (N, tm) tiles.

    out_refs is (raw_ref, dec_ref), or just (dec_ref,) when the caller only needs z.
    Row n of the (N, tm) tile corresponds to anchor a = n // no, channel c = n % no,
    i.e. exactly conv.view(B, na, no, H, W).
    """
    if len(out_refs) == 2:
        raw_ref, dec_ref = out_refs
    else:
        raw_ref = None
        (dec_ref,) = out_refs

    # Packed per-row constants, column-sliced (static slices -> no runtime cost).
    bias = consts_ref[:, 0:1]      # (N, 1)
    lin = consts_ref[:, 1:2]
    quad = consts_ref[:, 2:3]
    sel_x = consts_ref[:, 3:4]
    sel_y = consts_ref[:, 4:5]

    # 1x1 conv: (N, Cin)bf16 @ (Cin, tm)bf16 -> (N, tm)f32 on the MXU, + bias.
    conv = jnp.dot(w_ref[...], x_ref[...],
                   preferred_element_type=jnp.float32) + bias
    if raw_ref is not None:
        raw_ref[...] = conv.astype(raw_ref.dtype)   # bf16 store: halves writeback

    sig = jax.nn.sigmoid(conv)                      # EUP

    # Decode (all selectors precomputed; fused form saves one (N, tm) multiply):
    #   c < 2 (xy):  (2*sig + coord - 0.5) * stride  -> lin = 2*stride, + grid term
    #   c in {2,3}:  (2*sig)^2 * anchor*stride       -> quad = 4*anchor*stride
    #   c >= 4:      sig                             -> lin = 1
    grid_add = sel_x * gxy_ref[0:1, :] + sel_y * gxy_ref[1:2, :]
    dec_ref[...] = sig * (quad * sig + lin) + grid_add


def detect_layer(x_nchw, weight, bias, anchors_l, stride, num_anchors, num_outputs,
                 need_raw=True):
    """One detection layer: 1x1 conv + YOLO decode, fused in a single Pallas kernel."""
    B, Cin, H, W = x_nchw.shape
    no = num_outputs
    na = num_anchors
    N = na * no
    HW = H * W
    stride = float(stride)

    tm = _pick_lane_tile(HW)   # divides HW exactly -> no pad, no post-kernel slice

    # NCHW -> (B, Cin, HW): pure reshape, no data movement.  bf16 feeds the MXU and
    # halves the x-input DMA.  TODO(synk): in a full model the upstream layer would
    # already emit bf16, making this cast free.
    x_r = x_nchw.reshape(B, Cin, HW).astype(jnp.bfloat16)
    w_mat = weight.reshape(N, Cin).astype(jnp.bfloat16)          # (N, Cin)

    # Per-output-row decode constants (row n = a*no + c), packed into ONE (N, 8)
    # operand so the pipeline moves a single tiny block per step instead of five.
    c_idx = jnp.arange(N, dtype=jnp.int32) % no
    a_idx = jnp.arange(N, dtype=jnp.int32) // no
    lin_coef = jnp.where(c_idx < 2, 2.0 * stride,
                         jnp.where(c_idx >= 4, 1.0, 0.0)).astype(jnp.float32)
    anch_scaled = anchors_l.astype(jnp.float32) * stride         # (na, 2)
    anch_rows = anch_scaled[a_idx, jnp.clip(c_idx - 2, 0, 1)]
    quad_coef = jnp.where((c_idx == 2) | (c_idx == 3),
                          4.0 * anch_rows, 0.0).astype(jnp.float32)
    sel_x = (c_idx == 0).astype(jnp.float32)
    sel_y = (c_idx == 1).astype(jnp.float32)
    zeros = jnp.zeros((N,), jnp.float32)
    consts = jnp.stack([bias.reshape(N).astype(jnp.float32), lin_coef, quad_coef,
                        sel_x, sel_y, zeros, zeros, zeros], axis=1)   # (N, 8)

    # Per-column grid offsets (already scaled by stride): gx = stride*(x_idx - 0.5).
    m = jnp.arange(HW, dtype=jnp.int32)
    gx = stride * ((m % W).astype(jnp.float32) - 0.5)
    gy = stride * ((m // W).astype(jnp.float32) - 0.5)
    gxy = jnp.stack([gx, gy], axis=0)                            # (2, HW)

    grid = (B, HW // tm)   # both "parallel" -> v7x megacore can split the 2 TCs

    out_shapes = []
    out_specs = []
    if need_raw:
        out_shapes.append(jax.ShapeDtypeStruct((B, N, HW), jnp.bfloat16))
        out_specs.append(pl.BlockSpec((None, N, tm), lambda b, i: (b, 0, i)))
    out_shapes.append(jax.ShapeDtypeStruct((B, N, HW), jnp.float32))
    out_specs.append(pl.BlockSpec((None, N, tm), lambda b, i: (b, 0, i)))

    outs = pl.pallas_call(
        _detect_layer_kernel,
        out_shape=tuple(out_shapes),
        grid_spec=pltpu.PrefetchScalarGridSpec(
            num_scalar_prefetch=0,
            grid=grid,
            in_specs=[
                pl.BlockSpec((None, Cin, tm), lambda b, i: (b, 0, i)),  # x tile (bf16)
                pl.BlockSpec((N, Cin), lambda b, i: (0, 0)),            # weights (bf16)
                pl.BlockSpec((N, 8), lambda b, i: (0, 0)),              # packed consts
                pl.BlockSpec((2, tm), lambda b, i: (0, i)),             # grid offsets
            ],
            out_specs=tuple(out_specs),
        ),
        compiler_params=pltpu.CompilerParams(
            dimension_semantics=("parallel", "parallel")),
    )(x_r, w_mat, consts, gxy)

    if need_raw:
        raw, dec = outs
    else:
        (dec,) = outs
        raw = None

    # (B, N, HW) -> (B, na, H, W, no): matches torch view+permute.  raw stays bf16 so
    # this glue pass moves half the bytes.
    # TODO(synk): benchmark emitting dec directly in (B, na, HW, no) z-layout via
    # in-kernel XLU transposes (masked no-wide stores) vs this external XLA transpose.
    dec_y = dec.reshape(B, na, no, H, W).transpose(0, 1, 3, 4, 2)
    z = dec_y.reshape(B, na * H * W, no)
    raw_x = None
    if need_raw:
        raw_x = raw.reshape(B, na, no, H, W).transpose(0, 1, 3, 4, 2)
    return raw_x, z


def detect_forward(xs, weights, biases, anchors, strides, num_anchors, num_outputs,
                   need_raw=True):
    """Detect.forward in eval (non-export) mode: returns (cat(z, 1), x_list)."""
    z_parts, x_outs = [], []
    for i in range(len(xs)):
        raw_x, z = detect_layer(xs[i], weights[i], biases[i], anchors[i],
                                strides[i], num_anchors, num_outputs,
                                need_raw=need_raw)
        x_outs.append(raw_x)
        z_parts.append(z)
    z_cat = jnp.concatenate(z_parts, axis=1)
    return (z_cat, x_outs) if need_raw else (z_cat, None)


def detect_reference(xs, weights, biases, anchors, strides, na, no,
                     conv_dtype=jnp.float32):
    """Pure-JAX reference mirroring the PyTorch forward (eval mode).

    conv_dtype=bf16 mirrors the kernel's bf16 MXU inputs (f32 accumulation) so the
    comparison stays tight; conv_dtype=f32 is the strict full-precision reference
    (checked with relaxed tolerance, since the kernel matmul runs in bf16).
    """
    z, outs = [], []
    for i, x in enumerate(xs):
        B, C, H, W = x.shape
        w = weights[i].reshape(-1, C).astype(conv_dtype)
        conv = jnp.einsum('bchw,nc->bnhw', x.astype(conv_dtype), w,
                          preferred_element_type=jnp.float32,
                          precision=jax.lax.Precision.HIGHEST)
        conv = conv + biases[i][None, :, None, None]
        xi = conv.reshape(B, na, no, H, W).transpose(0, 1, 3, 4, 2)
        outs.append(xi)
        sig = jax.nn.sigmoid(xi)
        xy, wh, conf = jnp.split(sig, [2, 4], axis=4)
        yv, xv = jnp.meshgrid(jnp.arange(H, dtype=jnp.float32),
                              jnp.arange(W, dtype=jnp.float32), indexing='ij')
        grid = jnp.stack((xv, yv), 2)[None, None] - 0.5
        anchor_grid = (anchors[i] * strides[i]).reshape(1, na, 1, 1, 2)
        xy = (xy * 2 + grid) * strides[i]
        wh = (wh * 2) ** 2 * anchor_grid
        y = jnp.concatenate((xy, wh, conf), 4)
        z.append(y.reshape(B, na * H * W, no))
    return jnp.concatenate(z, 1), outs


if __name__ == "__main__":
    key = jax.random.PRNGKey(0)

    # Small synthetic Detect config
    num_classes = 4
    num_outputs = num_classes + 5                      # 9
    anchors = ((10., 13., 16., 30., 33., 23.),
               (30., 61., 62., 45., 59., 119.),
               (116., 90., 156., 198., 373., 326.))
    ch = (8, 16, 32)                                   # input channels per level
    spatial = (16, 8, 4)                               # feature-map sizes per level
    strides = (8.0, 16.0, 32.0)                        # Detect.stride
    B = 2
    nl = len(anchors)
    na = len(anchors[0]) // 2
    anchors_arr = jnp.array(anchors, jnp.float32).reshape(nl, na, 2)

    # Deterministic inputs / parameters (1x1 conv per level)
    keys = jax.random.split(key, 3 * nl)
    xs, weights, biases = [], [], []
    for i in range(nl):
        k_x, k_w, k_b = keys[3 * i], keys[3 * i + 1], keys[3 * i + 2]
        xs.append(jax.random.normal(k_x, (B, ch[i], spatial[i], spatial[i]),
                                    jnp.float32))
        N = na * num_outputs
        weights.append(0.1 * jax.random.normal(k_w, (N, ch[i], 1, 1), jnp.float32))
        biases.append(0.1 * jax.random.normal(k_b, (N,), jnp.float32))

    # Pallas kernel forward (eval, non-export): (cat(z, 1), x_list)
    z_cat, x_outs = detect_forward(xs, weights, biases, anchors_arr, strides,
                                   na, num_outputs, need_raw=True)
    jax.block_until_ready(z_cat)
    for xo in x_outs:
        jax.block_until_ready(xo)

    # z-only path (raw output dropped inside the kernel): must match.
    z_only, _ = detect_forward(xs, weights, biases, anchors_arr, strides,
                               na, num_outputs, need_raw=False)
    jax.block_until_ready(z_only)

    # References: one mirroring the kernel's bf16 matmul inputs (tight tolerance),
    # one full-f32 (relaxed tolerance — bf16 MXU inputs; wh scales with stride*anchor).
    z_ref_bf, x_ref_bf = detect_reference(xs, weights, biases, anchors_arr, strides,
                                          na, num_outputs, conv_dtype=jnp.bfloat16)
    z_ref_f32, x_ref_f32 = detect_reference(xs, weights, biases, anchors_arr, strides,
                                            na, num_outputs, conv_dtype=jnp.float32)

    assert z_cat.shape == (B, sum(na * s * s for s in spatial), num_outputs)
    assert jnp.allclose(z_cat, z_only, atol=1e-5, rtol=1e-5)
    assert jnp.allclose(z_cat, z_ref_bf, atol=2e-1, rtol=2e-2)
    assert jnp.allclose(z_cat, z_ref_f32, atol=1.0, rtol=5e-2)
    for a_out, b_bf, b_f32 in zip(x_outs, x_ref_bf, x_ref_f32):
        assert a_out.shape == b_f32.shape
        a32 = a_out.astype(jnp.float32)          # raw is stored/returned in bf16
        assert jnp.allclose(a32, b_bf, atol=5e-2, rtol=5e-2)
        assert jnp.allclose(a32, b_f32, atol=1e-1, rtol=5e-2)

    print("KERNEL_OK")
</pallas_src>

<mosaic_0001>
module attributes {stable_mosaic.version = 11 : i64} {
  func.func @_detect_layer_kernel(%arg0: i32, %arg1: i32, %arg2: memref<1x8x256xbf16, #tpu.memory_space<vmem>>, %arg3: memref<27x8xbf16, #tpu.memory_space<vmem>>, %arg4: memref<27x8xf32, #tpu.memory_space<vmem>>, %arg5: memref<2x256xf32, #tpu.memory_space<vmem>>, %arg6: memref<1x27x256xbf16, #tpu.memory_space<vmem>>, %arg7: memref<1x27x256xf32, #tpu.memory_space<vmem>>) attributes {dimension_semantics = [#tpu.dimension_semantics<parallel>, #tpu.dimension_semantics<parallel>], iteration_bounds = array<i64: 2, 1>, scalar_prefetch = 0 : i64, scratch_operands = 0 : i64, tpu.core_type = #tpu.core_type<tc>, window_params = [{transform_indices = @transform_0, window_bounds = array<i64: 1, 8, 256>}, {pipeline_mode = #tpu.pipeline_mode<synchronous>, transform_indices = @transform_1, window_bounds = array<i64: 27, 8>}, {pipeline_mode = #tpu.pipeline_mode<synchronous>, transform_indices = @transform_2, window_bounds = array<i64: 27, 8>}, {transform_indices = @transform_3, window_bounds = array<i64: 2, 256>}, {transform_indices = @transform_4, window_bounds = array<i64: 1, 27, 256>}, {transform_indices = @transform_5, window_bounds = array<i64: 1, 27, 256>}]} {
    %c0 = arith.constant 0 : index
    %c0_0 = arith.constant 0 : index
    %0 = vector.load %arg4[%c0, %c0_0] : memref<27x8xf32, #tpu.memory_space<vmem>>, vector<27x1xf32>
    %c0_1 = arith.constant 0 : index
    %c1 = arith.constant 1 : index
    %1 = vector.load %arg4[%c0_1, %c1] : memref<27x8xf32, #tpu.memory_space<vmem>>, vector<27x1xf32>
    %c0_2 = arith.constant 0 : index
    %c2 = arith.constant 2 : index
    %2 = vector.load %arg4[%c0_2, %c2] : memref<27x8xf32, #tpu.memory_space<vmem>>, vector<27x1xf32>
    %c0_3 = arith.constant 0 : index
    %c3 = arith.constant 3 : index
    %3 = vector.load %arg4[%c0_3, %c3] : memref<27x8xf32, #tpu.memory_space<vmem>>, vector<27x1xf32>
    %c0_4 = arith.constant 0 : index
    %c4 = arith.constant 4 : index
    %4 = vector.load %arg4[%c0_4, %c4] : memref<27x8xf32, #tpu.memory_space<vmem>>, vector<27x1xf32>
    %c0_5 = arith.constant 0 : index
    %c0_6 = arith.constant 0 : index
    %5 = vector.load %arg3[%c0_5, %c0_6] : memref<27x8xbf16, #tpu.memory_space<vmem>>, vector<27x8xbf16>
    %c0_7 = arith.constant 0 : index
    %c0_8 = arith.constant 0 : index
    %c0_9 = arith.constant 0 : index
    %6 = vector.load %arg2[%c0_7, %c0_8, %c0_9] : memref<1x8x256xbf16, #tpu.memory_space<vmem>>, vector<1x8x256xbf16>
    %7 = vector.shape_cast %6 : vector<1x8x256xbf16> to vector<8x256xbf16>
    %cst = arith.constant dense<0.000000e+00> : vector<27x256xf32>
    %8 = tpu.matmul %5, %7, %cst {dimension_numbers = #tpu.dot_dimension_numbers<[1], [0], [0], [1], [0, 0, 1, 1], [], []>} : vector<27x8xbf16>, vector<8x256xbf16>, vector<27x256xf32> -> vector<27x256xf32>
    %9 = vector.broadcast %0 : vector<27x1xf32> to vector<27x256xf32>
    %10 = arith.addf %8, %9 : vector<27x256xf32>
    %11 = arith.truncf %10 : vector<27x256xf32> to vector<27x256xbf16>
    %c0_10 = arith.constant 0 : index
    %c0_11 = arith.constant 0 : index
    %c0_12 = arith.constant 0 : index
    %12 = vector.load %arg6[%c0_10, %c0_11, %c0_12] : memref<1x27x256xbf16, #tpu.memory_space<vmem>>, vector<1x27x256xbf16>
    %13 = vector.shape_cast %12 : vector<1x27x256xbf16> to vector<27x256xbf16>
    %14 = vector.shape_cast %11 : vector<27x256xbf16> to vector<1x27x256xbf16>
    tpu.vector_store %arg6[%c0_10, %c0_11, %c0_12], %14 {strides = array<i32>} : memref<1x27x256xbf16, #tpu.memory_space<vmem>>, vector<1x27x256xbf16>,
    %15 = arith.negf %10 : vector<27x256xf32>
    %16 = math.exp %15 : vector<27x256xf32>
    %cst_13 = arith.constant 1.000000e+00 : f32
    %17 = vector.broadcast %cst_13 : f32 to vector<27x256xf32>
    %18 = arith.addf %17, %16 : vector<27x256xf32>
    %19 = arith.divf %17, %18 : vector<27x256xf32>
    %c0_14 = arith.constant 0 : index
    %c0_15 = arith.constant 0 : index
    %20 = vector.load %arg5[%c0_14, %c0_15] : memref<2x256xf32, #tpu.memory_space<vmem>>, vector<1x256xf32>
    %21 = vector.broadcast %3 : vector<27x1xf32> to vector<27x256xf32>
    %22 = vector.broadcast %20 : vector<1x256xf32> to vector<27x256xf32>
    %23 = arith.mulf %21, %22 : vector<27x256xf32>
    %c1_16 = arith.constant 1 : index
    %c0_17 = arith.constant 0 : index
    %24 = vector.load %arg5[%c1_16, %c0_17] : memref<2x256xf32, #tpu.memory_space<vmem>>, vector<1x256xf32>
    %25 = vector.broadcast %4 : vector<27x1xf32> to vector<27x256xf32>
    %26 = vector.broadcast %24 : vector<1x256xf32> to vector<27x256xf32>
    %27 = arith.mulf %25, %26 : vector<27x256xf32>
    %28 = arith.addf %23, %27 : vector<27x256xf32>
    %29 = vector.broadcast %2 : vector<27x1xf32> to vector<27x256xf32>
    %30 = arith.mulf %29, %19 : vector<27x256xf32>
    %31 = vector.broadcast %1 : vector<27x1xf32> to vector<27x256xf32>
    %32 = arith.addf %30, %31 : vector<27x256xf32>
    %33 = arith.mulf %19, %32 : vector<27x256xf32>
    %34 = arith.addf %33, %28 : vector<27x256xf32>
    %c0_18 = arith.constant 0 : index
    %c0_19 = arith.constant 0 : index
    %c0_20 = arith.constant 0 : index
    %35 = vector.load %arg7[%c0_18, %c0_19, %c0_20] : memref<1x27x256xf32, #tpu.memory_space<vmem>>, vector<1x27x256xf32>
    %36 = vector.shape_cast %35 : vector<1x27x256xf32> to vector<27x256xf32>
    %37 = vector.shape_cast %34 : vector<27x256xf32> to vector<1x27x256xf32>
    tpu.vector_store %arg7[%c0_18, %c0_19, %c0_20], %37 {strides = array<i32>} : memref<1x27x256xf32, #tpu.memory_space<vmem>>, vector<1x27x256xf32>,
    return
  }
  func.func @transform_0(%arg0: i32, %arg1: i32) -> (i32, i32, i32) {
    %c0_i32 = arith.constant 0 : i32
    %c0_i32_0 = arith.constant 0 : i32
    return %arg0, %c0_i32, %arg1 : i32, i32, i32
  }
  func.func @transform_1(%arg0: i32, %arg1: i32) -> (i32, i32) {
    %c0_i32 = arith.constant 0 : i32
    %c0_i32_0 = arith.constant 0 : i32
    %c0_i32_1 = arith.constant 0 : i32
    return %c0_i32, %c0_i32_0 : i32, i32
  }
  func.func @transform_2(%arg0: i32, %arg1: i32) -> (i32, i32) {
    %c0_i32 = arith.constant 0 : i32
    %c0_i32_0 = arith.constant 0 : i32
    %c0_i32_1 = arith.constant 0 : i32
    return %c0_i32, %c0_i32_0 : i32, i32
  }
  func.func @transform_3(%arg0: i32, %arg1: i32) -> (i32, i32) {
    %c0_i32 = arith.constant 0 : i32
    %c0_i32_0 = arith.constant 0 : i32
    return %c0_i32, %arg1 : i32, i32
  }
  func.func @transform_4(%arg0: i32, %arg1: i32) -> (i32, i32, i32) {
    %c0_i32 = arith.constant 0 : i32
    %c0_i32_0 = arith.constant 0 : i32
    return %arg0, %c0_i32, %arg1 : i32, i32, i32
  }
  func.func @transform_5(%arg0: i32, %arg1: i32) -> (i32, i32, i32) {
    %c0_i32 = arith.constant 0 : i32
    %c0_i32_0 = arith.constant 0 : i32
    return %arg0, %c0_i32, %arg1 : i32, i32, i32
  }
}

</mosaic_0001>

<llo_original>
// kernel: tpu_custom_call.1
$region0: #{tpu_custom_call.1}
  #allocation0 [shape = 'u32[]', space=smem, size = 0x4, offset = 0x4, fixed_abs, tag = 'smem constant byte address 0x4 - core index']
  #allocation1 [shape = 'u32[144,128]{1,0:T(1,128)}', space=vmem, size = 0x12000, scoped, tag = 'internal scratch']
  %s0 = inlined_call_operand.vmem [shape: bf16[2,8,256], index: 0, kind: input, shape index: {}]
  %s1 = inlined_call_operand.vmem [shape: bf16[27,8], index: 1, kind: input, shape index: {}]
  %s2 = inlined_call_operand.vmem [shape: f32[27,8], index: 2, kind: input, shape index: {}]
  %s3 = inlined_call_operand.vmem [shape: f32[2,256], index: 3, kind: input, shape index: {}]
  %s4 = inlined_call_operand.vmem [shape: bf16[2,27,256], index: 4, kind: output, shape index: {0}]
  %s5 = inlined_call_operand.vmem [shape: f32[2,27,256], index: 5, kind: output, shape index: {1}]
  %6 = xla_tuple %s4, %s5
  %s7 = sld [smem:[#allocation0]]
  $region57: #{tpu_custom_call.1} parent=0
    _
  %s9 = ssub.s32 1, %s7
  %s10 = scalar_select 0, %s9, %s7
  loop: start=0, step=1, limit=4
  $region2: #{tpu_custom_call.1} parent=0 // loop_pre_header
    _
  $region3: #{tpu_custom_call.1} parent=0 // loop_header
    %s12 = sphi 0, %s16
    %p13 = scmp.ge.s32.totalorder %s12, 4
    %s19 = sphi 0, %s31
    %s20 = sphi 0, %s27
    %s21 = sphi 0, %s19
    %s22 = sphi 0, %s20
    %s23 = sphi 0, %s21
    %s24 = sphi 0, %s22
    %s36 = sphi 0, %s38
    %s39 = sphi 0, %s36
    %s40 = sphi 0, %s39
    %s56 = sphi 0, %s40
    %s60 = sphi 0, %s60
    %s62 = sphi 0, %s60
    %s63 = sphi 0, %s62
    %s77 = sphi 0, %s63
    %s81 = sphi 0, %s81
    %s83 = sphi 0, %s81
    %s84 = sphi 0, %s83
    %s98 = sphi 0, %s84
    %s104 = sphi 0, %s106
    %s107 = sphi 0, %s104
    %s108 = sphi 0, %s107
    %s124 = sphi 0, %s108
    %s132 = sphi 0, %s134
    %s135 = sphi 0, %s132
    %s136 = sphi 0, %s135
    %s152 = sphi 0, %s136
    %s160 = sphi 0, %s162
    %s163 = sphi 0, %s160
    %s164 = sphi 0, %s163
    %s180 = sphi 0, %s164
  $region4: #{tpu_custom_call.1} parent=0 // loop_header_branch
    %15 = sbr.rel (%p13) target = $region8
  $region5: #{tpu_custom_call.1} parent=0 // loop_body
    %s17 = ssub.s32 %s12, 1
    %s18 = ssub.s32 %s12, 2
    %s25 = sadd.s32 1, %s20
    %p26 = scmp.ge.s32.totalorder %s25, 1
    %s27 = scalar_select %p26, 0, %s25
    %s28 = sadd.s32 1, %s19
    %s29 = scalar_select %p26, %s28, %s19
    %p30 = scmp.ge.s32.totalorder %s29, 2
    %s31 = scalar_select %p30, 0, %s29
    %s32 = ssub.s32 %s19, %s31
    %s33 = ssub.s32 %s20, %s27
    %s34 = sor.u32 %s32, %s33
    %p35 = scmp.eq.s32.totalorder %s34, 0
    %s37 = sadd.s32 %s36, 1
    %s38 = scalar_select %p35, %s36, %s37
    %p41 = pneg %p35
    %p42 = scmp.eq.s32.totalorder %s12, 1
    %p43 = por %p41, %p42
    %p44 = scmp.ne.s32.totalorder %s36, %s39
    %p45 = scmp.eq.s32.totalorder %s12, 0
    %p46 = por %p44, %p45
    %p47 = scmp.ne.s32.totalorder %s36, %s39
    %p48 = scmp.eq.s32.totalorder %s17, 1
    %p49 = por %p47, %p48
    %p50 = scmp.ne.s32.totalorder %s39, %s40
    %p51 = scmp.eq.s32.totalorder %s17, 0
    %p52 = por %p50, %p51
    %p53 = scmp.ne.s32.totalorder %s39, %s40
    %p54 = scmp.eq.s32.totalorder %s18, 1
    %p55 = por %p53, %p54
    %p57 = scmp.ne.s32.totalorder %s40, %s56
    %p58 = scmp.eq.s32.totalorder %s18, 0
    %p59 = por %p57, %p58
    %s61 = sadd.s32 %s60, 1
    %p64 = scmp.eq.s32.totalorder %s12, 1
    %p65 = scmp.ne.s32.totalorder %s60, %s62
    %p66 = scmp.eq.s32.totalorder %s12, 0
    %p67 = por %p65, %p66
    %p68 = scmp.ne.s32.totalorder %s60, %s62
    %p69 = scmp.eq.s32.totalorder %s17, 1
    %p70 = por %p68, %p69
    %p71 = scmp.ne.s32.totalorder %s62, %s63
    %p72 = scmp.eq.s32.totalorder %s17, 0
    %p73 = por %p71, %p72
    %p74 = scmp.ne.s32.totalorder %s62, %s63
    %p75 = scmp.eq.s32.totalorder %s18, 1
    %p76 = por %p74, %p75
    %p78 = scmp.ne.s32.totalorder %s63, %s77
    %p79 = scmp.eq.s32.totalorder %s18, 0
    %p80 = por %p78, %p79
    %s82 = sadd.s32 %s81, 1
    %p85 = scmp.eq.s32.totalorder %s12, 1
    %p86 = scmp.ne.s32.totalorder %s81, %s83
    %p87 = scmp.eq.s32.totalorder %s12, 0
    %p88 = por %p86, %p87
    %p89 = scmp.ne.s32.totalorder %s81, %s83
    %p90 = scmp.eq.s32.totalorder %s17, 1
    %p91 = por %p89, %p90
    %p92 = scmp.ne.s32.totalorder %s83, %s84
    %p93 = scmp.eq.s32.totalorder %s17, 0
    %p94 = por %p92, %p93
    %p95 = scmp.ne.s32.totalorder %s83, %s84
    %p96 = scmp.eq.s32.totalorder %s18, 1
    %p97 = por %p95, %p96
    %p99 = scmp.ne.s32.totalorder %s84, %s98
    %p100 = scmp.eq.s32.totalorder %s18, 0
    %p101 = por %p99, %p100
    %s102 = ssub.s32 %s20, %s27
    %p103 = scmp.eq.s32.totalorder %s102, 0
    %s105 = sadd.s32 %s104, 1
    %s106 = scalar_select %p103, %s104, %s105
    %p109 = pneg %p103
    %p110 = scmp.eq.s32.totalorder %s12, 1
    %p111 = por %p109, %p110
    %p112 = scmp.ne.s32.totalorder %s104, %s107
    %p113 = scmp.eq.s32.totalorder %s12, 0
    %p114 = por %p112, %p113
    %p115 = scmp.ne.s32.totalorder %s104, %s107
    %p116 = scmp.eq.s32.totalorder %s17, 1
    %p117 = por %p115, %p116
    %p118 = scmp.ne.s32.totalorder %s107, %s108
    %p119 = scmp.eq.s32.totalorder %s17, 0
    %p120 = por %p118, %p119
    %p121 = scmp.ne.s32.totalorder %s107, %s108
    %p122 = scmp.eq.s32.totalorder %s18, 1
    %p123 = por %p121, %p122
    %p125 = scmp.ne.s32.totalorder %s108, %s124
    %p126 = scmp.eq.s32.totalorder %s18, 0
    %p127 = por %p125, %p126
    %s128 = ssub.s32 %s19, %s31
    %s129 = ssub.s32 %s20, %s27
    %s130 = sor.u32 %s128, %s129
    %p131 = scmp.eq.s32.totalorder %s130, 0
    %s133 = sadd.s32 %s132, 1
    %s134 = scalar_select %p131, %s132, %s133
    %p137 = pneg %p131
    %p138 = scmp.eq.s32.totalorder %s12, 1
    %p139 = por %p137, %p138
    %p140 = scmp.ne.s32.totalorder %s132, %s135
    %p141 = scmp.eq.s32.totalorder %s12, 0
    %p142 = por %p140, %p141
    %p143 = scmp.ne.s32.totalorder %s132, %s135
    %p144 = scmp.eq.s32.totalorder %s17, 1
    %p145 = por %p143, %p144
    %p146 = scmp.ne.s32.totalorder %s135, %s136
    %p147 = scmp.eq.s32.totalorder %s17, 0
    %p148 = por %p146, %p147
    %p149 = scmp.ne.s32.totalorder %s135, %s136
    %p150 = scmp.eq.s32.totalorder %s18, 1
    %p151 = por %p149, %p150
    %p153 = scmp.ne.s32.totalorder %s136, %s152
    %p154 = scmp.eq.s32.totalorder %s18, 0
    %p155 = por %p153, %p154
    %s156 = ssub.s32 %s19, %s31
    %s157 = ssub.s32 %s20, %s27
    %s158 = sor.u32 %s156, %s157
    %p159 = scmp.eq.s32.totalorder %s158, 0
    %s161 = sadd.s32 %s160, 1
    %s162 = scalar_select %p159, %s160, %s161
    %p165 = pneg %p159
    %p166 = scmp.eq.s32.totalorder %s12, 1
    %p167 = por %p165, %p166
    %p168 = scmp.ne.s32.totalorder %s160, %s163
    %p169 = scmp.eq.s32.totalorder %s12, 0
    %p170 = por %p168, %p169
    %p171 = scmp.ne.s32.totalorder %s160, %s163
    %p172 = scmp.eq.s32.totalorder %s17, 1
    %p173 = por %p171, %p172
    %p174 = scmp.ne.s32.totalorder %s163, %s164
    %p175 = scmp.eq.s32.totalorder %s17, 0
    %p176 = por %p174, %p175
    %p177 = scmp.ne.s32.totalorder %s163, %s164
    %p178 = scmp.eq.s32.totalorder %s18, 1
    %p179 = por %p177, %p178
    %p181 = scmp.ne.s32.totalorder %s164, %s180
    %p182 = scmp.eq.s32.totalorder %s18, 0
    %p183 = por %p181, %p182
    %p184 = scmp.le.s32.totalorder 1, %s12
    %p185 = scmp.lt.s32.totalorder %s12, 3
    %p186 = pnand %p184, %p185
    %p187 = pneg %p186
    // Predicated region
    $region9: #{tpu_custom_call.1} parent=5 // pred_check
      _
    $region10: #{tpu_custom_call.1} parent=5 // pred_check_branch
      %189 = sbr.rel (%p186) target = $region12
    $region11: #{tpu_custom_call.1} parent=5 // pred_region
      %s190 = ssub.s32 %s12, 1
      // Predicated region
      $region13: #{tpu_custom_call.1} parent=11 // pred_check
        %p191 = pneg %p73
      $region14: #{tpu_custom_call.1} parent=11 // pred_check_branch
        %193 = sbr.rel (%p191) target = $region16
      $region15: #{tpu_custom_call.1} parent=11 // pred_region
        _
      $region16: #{tpu_custom_call.1} parent=11 // pred_fallthru
        _
      // Predicated region
      $region17: #{tpu_custom_call.1} parent=11 // pred_check
        %p194 = pneg %p94
      $region18: #{tpu_custom_call.1} parent=11 // pred_check_branch
        %196 = sbr.rel (%p194) target = $region20
      $region19: #{tpu_custom_call.1} parent=11 // pred_region
        _
      $region20: #{tpu_custom_call.1} parent=11 // pred_fallthru
        _
      // Predicated region
      $region21: #{tpu_custom_call.1} parent=11 // pred_check
        %p197 = pneg %p120
      $region22: #{tpu_custom_call.1} parent=11 // pred_check_branch
        %199 = sbr.rel (%p197) target = $region24
      $region23: #{tpu_custom_call.1} parent=11 // pred_region
        %s200 = smul.u32 2, %s22
        %p201 = scmp.lt.s32.totalorder %s200, 1
        %s202 = scalar_select %p201, %s200, 1
        %s203 = smul.addr %s202, 2
        %s204 = scalar_lea.vmem %s3, %s203
        %s205 = smul.u32 2, %s22
      $region24: #{tpu_custom_call.1} parent=11 // pred_fallthru
        _
    $region12: #{tpu_custom_call.1} parent=5 // pred_fallthru
      _
    %p206 = scmp.lt.s32.totalorder %s12, 2
    // Predicated region
    $region25: #{tpu_custom_call.1} parent=5 // pred_check
      %p207 = pneg %p206
    $region26: #{tpu_custom_call.1} parent=5 // pred_check_branch
      %209 = sbr.rel (%p207) target = $region28
    $region27: #{tpu_custom_call.1} parent=5 // pred_region
      // Predicated region
      $region29: #{tpu_custom_call.1} parent=27 // pred_check
        %p210 = pneg %p46
      $region30: #{tpu_custom_call.1} parent=27 // pred_check_branch
        %212 = sbr.rel (%p210) target = $region32
      $region31: #{tpu_custom_call.1} parent=27 // pred_region
        %s213 = smul.u32 2, %s20
        %p214 = scmp.lt.s32.totalorder %s19, 1
        %s215 = scalar_select %p214, %s19, 1
        %p216 = scmp.lt.s32.totalorder %s213, 1
        %s217 = scalar_select %p216, %s213, 1
        %s218 = smul.addr %s215, 2
        %s219 = sadd.s32 %s217, %s218
        %s220 = smul.addr %s219, 4
        %s221 = scalar_lea.vmem %s0, %s220
        %s222 = smul.u32 2, %s20
      $region32: #{tpu_custom_call.1} parent=27 // pred_fallthru
        _
    $region28: #{tpu_custom_call.1} parent=5 // pred_fallthru
      _
    %p223 = scmp.le.s32.totalorder 1, %s12
    %p224 = scmp.lt.s32.totalorder %s12, 3
    %p225 = pnand %p223, %p224
    %p226 = pneg %p225
    // Predicated region
    $region33: #{tpu_custom_call.1} parent=5 // pred_check
      _
    $region34: #{tpu_custom_call.1} parent=5 // pred_check_branch
      %228 = sbr.rel (%p225) target = $region36
    $region35: #{tpu_custom_call.1} parent=5 // pred_region
      %s229 = ssub.s32 %s12, 1
      %s230 = smul.u32 2, %s22
      %p231 = scmp.lt.s32.totalorder %s21, 1
      %s232 = scalar_select %p231, %s21, 1
      %p233 = scmp.lt.s32.totalorder %s230, 1
      %s234 = scalar_select %p233, %s230, 1
      %s235 = smul.addr %s232, 2
      %s236 = sadd.s32 %s234, %s235
      %s237 = smul.addr %s236, 4
      %s238 = scalar_lea.vmem %s0, %s237
      %p239 = pneg %p52
      %p240 = pneg %p49
      %p241 = pneg %p73
      %p242 = pneg %p70
      %p243 = pneg %p94
      %p244 = pneg %p91
      %s245 = smul.u32 2, %s22
      %p246 = scmp.lt.s32.totalorder %s245, 1
      %s247 = scalar_select %p246, %s245, 1
      %s248 = smul.addr %s247, 2
      %s249 = scalar_lea.vmem %s3, %s248
      %p250 = pneg %p120
      %p251 = pneg %p117
      %p252 = pneg %p148
      %p253 = pneg %p145
      %s254 = smul.u32 2, %s22
      %p255 = scmp.lt.s32.totalorder %s21, 1
      %s256 = scalar_select %p255, %s21, 1
      %p257 = scmp.lt.s32.totalorder %s254, 1
      %s258 = scalar_select %p257, %s254, 1
      %s259 = smul.addr %s256, 8
      %s260 = sadd.s32 %s258, %s259
      %s261 = smul.addr %s260, 4
      %s262 = scalar_lea.vmem %s4, %s261
      %p263 = pneg %p176
      %p264 = pneg %p173
      %s265 = smul.u32 2, %s22
      %p266 = scmp.lt.s32.totalorder %s21, 1
      %s267 = scalar_select %p266, %s21, 1
      %p268 = scmp.lt.s32.totalorder %s265, 1
      %s269 = scalar_select %p268, %s265, 1
      %s270 = smul.addr %s267, 8
      %s271 = sadd.s32 %s269, %s270
      %s272 = smul.addr %s271, 8
      %s273 = scalar_lea.vmem %s5, %s272
      %s274 = smul.u32 2, %s22
      %p275 = scmp.lt.s32.totalorder %s21, 1
      %s276 = scalar_select %p275, %s21, 1
      %p277 = scmp.lt.s32.totalorder %s274, 1
      %s278 = scalar_select %p277, %s274, 1
      %s279 = smul.addr %s276, 2
      %s280 = sadd.s32 %s278, %s279
      %s281 = smul.addr %s280, 4
      %s282 = scalar_lea.vmem %s0, %s281
      %s283 = smul.u32 2, %s22
      %s284 = smul.u32 2, %s22
      %p285 = scmp.lt.s32.totalorder %s284, 1
      %s286 = scalar_select %p285, %s284, 1
      %s287 = smul.addr %s286, 2
      %s288 = scalar_lea.vmem %s3, %s287
      %s289 = smul.u32 2, %s22
      %s290 = smul.u32 2, %s22
      %p291 = scmp.lt.s32.totalorder %s21, 1
      %s292 = scalar_select %p291, %s21, 1
      %p293 = scmp.lt.s32.totalorder %s290, 1
      %s294 = scalar_select %p293, %s290, 1
      %s295 = smul.addr %s292, 8
      %s296 = sadd.s32 %s294, %s295
      %s297 = smul.addr %s296, 4
      %s298 = scalar_lea.vmem %s4, %s297
      %s299 = smul.u32 2, %s22
      %s300 = smul.u32 2, %s22
      %p301 = scmp.lt.s32.totalorder %s21, 1
      %s302 = scalar_select %p301, %s21, 1
      %p303 = scmp.lt.s32.totalorder %s300, 1
      %s304 = scalar_select %p303, %s300, 1
      %s305 = smul.addr %s302, 8
      %s306 = sadd.s32 %s304, %s305
      %s307 = smul.addr %s306, 8
      %s308 = scalar_lea.vmem %s5, %s307
      %s309 = smul.u32 2, %s22
      %v311 = vld [vmem:[%s2] sm:$0xff]
      %v312 = vld [vmem:[%s2 + $0x8] sm:$0xff]
      %v313 = vld [vmem:[%s2 + $0x10] sm:$0xff]
      %v314 = vld [vmem:[%s2 + $0x18] sm:$0x7]
      %v315 = vld [vmem:[%s1] sm:$0xf]
      %v316 = vld [vmem:[%s1 + $0x4] sm:$0xf]
      %v317 = vld [vmem:[%s1 + $0x8] sm:$0xf]
      %v318 = vld [vmem:[%s1 + $0xc] sm:$0x3]
      %v319 = vld [vmem:[%s282] sm:$0xff]
      %321 = vset.pattern.permute.xlu0 0
      %322 = vperm.xlu0 %321, %v311
      %v323 = vpop.permute.xlu0 %322
      %326 = vset.pattern.permute.xlu0 0
      %327 = vperm.xlu0 %326, %v312
      %v328 = vpop.permute.xlu0 %327
      %331 = vset.pattern.permute.xlu0 0
      %332 = vperm.xlu0 %331, %v313
      %v333 = vpop.permute.xlu0 %332
      %336 = vset.pattern.permute.xlu0 0
      %337 = vperm.xlu0 %336, %v314
      %v338 = vpop.permute.xlu0 %337
      %v344 = vunpack.c.l.b16 %v315
      %v345 = vunpack.c.l.b16 %v316
      %v346 = vunpack.c.l.b16 %v317
      %v347 = vunpack.c.l.b16 %v318
      %v348 = vpack.c.b16 %v345, %v344
      %v349 = vpack.c.b16 %v347, %v346
      %v351 = vunpack.c.l.b16 %v319
      %v352 = vunpack.c.h.b16 %v319
      %v353 = vpack.c.b16 %v351, %v351
      %v354 = vpack.c.b16 %v352, %v352
      %vm355 = vcmask 64512
      %v357 = vsel %vm355, %v348, 0
      %v360 = vsel %vm355, %v349, 0
      %vm362 = vcmask 1043456
      %v364 = vsel %vm362, %v353, 0
      %v367 = vsel %vm362, %v354, 0
      %369 = vmatprep.subr.bf16.mxu0 %v367
      %370 = vmatpush1.bf16.msra.mxu0 %v364
      %371 = vmatprep.subr.bf16.mxu0 0
      %372 = vmatpush1.bf16.msra.mxu0 0
      %373 = vmatprep.subr.bf16.mxu0 0
      %374 = vmatpush1.bf16.msra.mxu0 0
      %375 = vmatprep.subr.bf16.mxu0 0
      %376 = vmatpush1.bf16.msra.mxu0 0
      %377 = vmatprep.subr.bf16.mxu0 0
      %378 = vmatpush1.bf16.msra.mxu0 0
      %379 = vmatprep.subr.bf16.mxu0 0
      %380 = vmatpush1.bf16.msra.mxu0 0
      %381 = vmatprep.subr.bf16.mxu0 0
      %382 = vmatpush1.bf16.msra.mxu0 0
      %383 = vmatprep.subr.bf16.mxu0 0
      %384 = vmatpush1.bf16.msra.mxu0 0
      %385 = vmatprep.subr.bf16.mxu0 0
      %386 = vmatpush1.bf16.msra.mxu0 0
      %387 = vmatprep.subr.bf16.mxu0 0
      %388 = vmatpush1.bf16.msra.mxu0 0
      %389 = vmatprep.subr.bf16.mxu0 0
      %390 = vmatpush1.bf16.msra.mxu0 0
      %391 = vmatprep.subr.bf16.mxu0 0
      %392 = vmatpush1.bf16.msra.mxu0 0
      %393 = vmatprep.subr.bf16.mxu0 0
      %394 = vmatpush1.bf16.msra.mxu0 0
      %395 = vmatprep.subr.bf16.mxu0 0
      %396 = vmatpush1.bf16.msra.mxu0 0
      %397 = vmatprep.subr.bf16.mxu0 0
      %398 = vmatpush1.bf16.msra.mxu0 0
      %399 = vmatprep.subr.bf16.mxu0 0
      %400 = vmatpush1.bf16.msra.mxu0 0
      %401 = vmatprep.mubr.bf16.mxu0 0
      %402 = vmatmul.mubr.bf16.gmra.mrb[0].mxu0 %v357
      %v403 = vpop.f32.mrb[0].mxu0
      %v404 = vadd.f32 %v323, %v403
      %v405 = vpop.f32.mrb[0].mxu0
      %v406 = vadd.f32 %v323, %v405
      %v407 = vpop.f32.mrb[0].mxu0
      %v408 = vadd.f32 %v328, %v407
      %v409 = vpop.f32.mrb[0].mxu0
      %v410 = vadd.f32 %v328, %v409
      %411 = vmatprep.mubr.bf16.mxu0 0
      %412 = vmatmul.mubr.bf16.gmra.mrb[0].mxu0 %v360
      %v413 = vpop.f32.mrb[0].mxu0
      %v414 = vadd.f32 %v333, %v413
      %v415 = vpop.f32.mrb[0].mxu0
      %v416 = vadd.f32 %v333, %v415
      %v417 = vpop.f32.mrb[0].mxu0
      %v418 = vadd.f32 %v338, %v417
      %v419 = vpop.f32.mrb[0].mxu0
      %v420 = vadd.f32 %v338, %v419
      %421 = vdwg.mxu0
      %v422 = vpack.c.bf16 %v408, %v404
      %v423 = vpack.c.bf16 %v410, %v406
      %v424 = vpack.c.bf16 %v418, %v414
      %v425 = vpack.c.bf16 %v420, %v416
      %v430 = vunpack.c.l.b16 %v422
      %v431 = vunpack.c.l.b16 %v423
      %v432 = vunpack.c.h.b16 %v422
      %v433 = vunpack.c.h.b16 %v423
      %v434 = vunpack.c.l.b16 %v424
      %v435 = vunpack.c.l.b16 %v425
      %v436 = vunpack.c.h.b16 %v424
      %v437 = vunpack.c.h.b16 %v425
      %v438 = vpack.c.b16 %v431, %v430
      %v439 = vpack.c.b16 %v433, %v432
      %v440 = vpack.c.b16 %v435, %v434
      %v441 = vpack.c.b16 %v437, %v436
      %446 = vst [vmem:[%s298] sm:$0xff] %v438
      %447 = vst [vmem:[%s298 + $0x8] sm:$0xff] %v439
      %448 = vst [vmem:[%s298 + $0x10] sm:$0xff] %v440
      %vm449 = vcmask 1041408
      %vm450 = vsmask.f32 1280
      %vm451 = vmand %vm449, %vm450
      %vm452 = vcmask 1045508
      %vm453 = vsmask.f32 5376
      %vm454 = vmand %vm452, %vm453
      %vm455 = vmor %vm454, %vm451
      %v456 = vld [vmem:[%s298 + $0x18] sm:$0x33]
      %v457 = vsel %vm455, %v441, %v456
      %458 = vst [vmem:[%s298 + $0x18] sm:$0x33] %v457
      %v459 = vxor.u32 %v404, 2147483648
      %v460 = vxor.u32 %v406, 2147483648
      %v461 = vxor.u32 %v408, 2147483648
      %v462 = vxor.u32 %v410, 2147483648
      %v463 = vxor.u32 %v414, 2147483648
      %v464 = vxor.u32 %v416, 2147483648
      %v465 = vxor.u32 %v418, 2147483648
      %v466 = vxor.u32 %v420, 2147483648
      %v467 = vmul.f32 %v459, 1.442695
      %v468 = vpow.pop %v467
      %v469 = vmul.f32 %v460, 1.442695
      %v470 = vpow.pop %v469
      %v471 = vmul.f32 %v461, 1.442695
      %v472 = vpow.pop %v471
      %v473 = vmul.f32 %v462, 1.442695
      %v474 = vpow.pop %v473
      %v475 = vmul.f32 %v463, 1.442695
      %v476 = vpow.pop %v475
      %v477 = vmul.f32 %v464, 1.442695
      %v478 = vpow.pop %v477
      %v479 = vmul.f32 %v465, 1.442695
      %v480 = vpow.pop %v479
      %v481 = vmul.f32 %v466, 1.442695
      %v482 = vpow.pop %v481
      %v483 = vadd.f32 %v468, 1.0
      %v484 = vadd.f32 %v470, 1.0
      %v485 = vadd.f32 %v472, 1.0
      %v486 = vadd.f32 %v474, 1.0
      %v487 = vadd.f32 %v476, 1.0
      %v488 = vadd.f32 %v478, 1.0
      %v489 = vadd.f32 %v480, 1.0
      %v490 = vadd.f32 %v482, 1.0
      %v491 = vrcp.pop %v483
      %v492 = vmul.f32 1.0, %v491
      %v493 = vrcp.pop %v484
      %v494 = vmul.f32 1.0, %v493
      %v495 = vrcp.pop %v485
      %v496 = vmul.f32 1.0, %v495
      %v497 = vrcp.pop %v486
      %v498 = vmul.f32 1.0, %v497
      %v499 = vrcp.pop %v487
      %v500 = vmul.f32 1.0, %v499
      %v501 = vrcp.pop %v488
      %v502 = vmul.f32 1.0, %v501
      %v503 = vrcp.pop %v489
      %v504 = vmul.f32 1.0, %v503
      %v505 = vrcp.pop %v490
      %v506 = vmul.f32 1.0, %v505
      %v507 = vld [vmem:[%s288] ss:$2 sm:$0x3]
      %508 = vset.pattern.permute.xlu0 3
      %509 = vperm.xlu0 %508, %v311
      %v510 = vpop.permute.xlu0 %509
      %512 = vset.pattern.permute.xlu0 3
      %513 = vperm.xlu0 %512, %v312
      %v514 = vpop.permute.xlu0 %513
      %516 = vset.pattern.permute.xlu0 3
      %517 = vperm.xlu0 %516, %v313
      %v518 = vpop.permute.xlu0 %517
      %520 = vset.pattern.permute.xlu0 3
      %521 = vperm.xlu0 %520, %v314
      %v522 = vpop.permute.xlu0 %521
      %v525 = vlaneseq
      %v526 = vshrl.u32 %v525, 7
      %v527 = vsub.s32 0, %v526
      %v528 = vrot.slane %v507, %v527
      %v529 = vlaneseq
      %v530 = vshrl.u32 %v529, 7
      %v531 = vsub.s32 1, %v530
      %v532 = vrot.slane %v507, %v531
      %v535 = vmul.f32 %v510, %v528
      %v536 = vmul.f32 %v510, %v532
      %v537 = vmul.f32 %v514, %v528
      %v538 = vmul.f32 %v514, %v532
      %v539 = vmul.f32 %v518, %v528
      %v540 = vmul.f32 %v518, %v532
      %v541 = vmul.f32 %v522, %v528
      %v542 = vmul.f32 %v522, %v532
      %s543 = scalar_lea.vmem %s288, 1
      %v544 = vld [vmem:[%s543] ss:$2 sm:$0x3]
      %545 = vset.pattern.permute.xlu0 4
      %546 = vperm.xlu0 %545, %v311
      %v547 = vpop.permute.xlu0 %546
      %549 = vset.pattern.permute.xlu0 4
      %550 = vperm.xlu0 %549, %v312
      %v551 = vpop.permute.xlu0 %550
      %553 = vset.pattern.permute.xlu0 4
      %554 = vperm.xlu0 %553, %v313
      %v555 = vpop.permute.xlu0 %554
      %557 = vset.pattern.permute.xlu0 4
      %558 = vperm.xlu0 %557, %v314
      %v559 = vpop.permute.xlu0 %558
      %v562 = vlaneseq
      %v563 = vshrl.u32 %v562, 7
      %v564 = vsub.s32 0, %v563
      %v565 = vrot.slane %v544, %v564
      %v566 = vlaneseq
      %v567 = vshrl.u32 %v566, 7
      %v568 = vsub.s32 1, %v567
      %v569 = vrot.slane %v544, %v568
      %v572 = vmul.f32 %v547, %v565
      %v573 = vmul.f32 %v547, %v569
      %v574 = vmul.f32 %v551, %v565
      %v575 = vmul.f32 %v551, %v569
      %v576 = vmul.f32 %v555, %v565
      %v577 = vmul.f32 %v555, %v569
      %v578 = vmul.f32 %v559, %v565
      %v579 = vmul.f32 %v559, %v569
      %v580 = vadd.f32 %v535, %v572
      %v581 = vadd.f32 %v536, %v573
      %v582 = vadd.f32 %v537, %v574
      %v583 = vadd.f32 %v538, %v575
      %v584 = vadd.f32 %v539, %v576
      %v585 = vadd.f32 %v540, %v577
      %v586 = vadd.f32 %v541, %v578
      %v587 = vadd.f32 %v542, %v579
      %588 = vset.pattern.permute.xlu0 2
      %589 = vperm.xlu0 %588, %v311
      %v590 = vpop.permute.xlu0 %589
      %592 = vset.pattern.permute.xlu0 2
      %593 = vperm.xlu0 %592, %v312
      %v594 = vpop.permute.xlu0 %593
      %596 = vset.pattern.permute.xlu0 2
      %597 = vperm.xlu0 %596, %v313
      %v598 = vpop.permute.xlu0 %597
      %600 = vset.pattern.permute.xlu0 2
      %601 = vperm.xlu0 %600, %v314
      %v602 = vpop.permute.xlu0 %601
      %v604 = vmul.f32 %v590, %v492
      %v605 = vmul.f32 %v590, %v494
      %v606 = vmul.f32 %v594, %v496
      %v607 = vmul.f32 %v594, %v498
      %v608 = vmul.f32 %v598, %v500
      %v609 = vmul.f32 %v598, %v502
      %v610 = vmul.f32 %v602, %v504
      %v611 = vmul.f32 %v602, %v506
      %612 = vset.pattern.permute.xlu0 1
      %613 = vperm.xlu0 %612, %v311
      %v614 = vpop.permute.xlu0 %613
      %616 = vset.pattern.permute.xlu0 1
      %617 = vperm.xlu0 %616, %v312
      %v618 = vpop.permute.xlu0 %617
      %620 = vset.pattern.permute.xlu0 1
      %621 = vperm.xlu0 %620, %v313
      %v622 = vpop.permute.xlu0 %621
      %624 = vset.pattern.permute.xlu0 1
      %625 = vperm.xlu0 %624, %v314
      %v626 = vpop.permute.xlu0 %625
      %v628 = vadd.f32 %v604, %v614
      %v629 = vadd.f32 %v605, %v614
      %v630 = vadd.f32 %v606, %v618
      %v631 = vadd.f32 %v607, %v618
      %v632 = vadd.f32 %v608, %v622
      %v633 = vadd.f32 %v609, %v622
      %v634 = vadd.f32 %v610, %v626
      %v635 = vadd.f32 %v611, %v626
      %v636 = vmul.f32 %v492, %v628
      %v637 = vmul.f32 %v494, %v629
      %v638 = vmul.f32 %v496, %v630
      %v639 = vmul.f32 %v498, %v631
      %v640 = vmul.f32 %v500, %v632
      %v641 = vmul.f32 %v502, %v633
      %v642 = vmul.f32 %v504, %v634
      %v643 = vmul.f32 %v506, %v635
      %v644 = vadd.f32 %v636, %v580
      %v645 = vadd.f32 %v637, %v581
      %v646 = vadd.f32 %v638, %v582
      %v647 = vadd.f32 %v639, %v583
      %v648 = vadd.f32 %v640, %v584
      %v649 = vadd.f32 %v641, %v585
      %v650 = vadd.f32 %v642, %v586
      %v651 = vadd.f32 %v643, %v587
      %652 = vst [vmem:[%s308] sm:$0xff] %v644
      %653 = vst [vmem:[%s308 + $0x8] sm:$0xff] %v645
      %654 = vst [vmem:[%s308 + $0x10] sm:$0xff] %v646
      %655 = vst [vmem:[%s308 + $0x18] sm:$0xff] %v647
      %656 = vst [vmem:[%s308 + $0x20] sm:$0xff] %v648
      %657 = vst [vmem:[%s308 + $0x28] sm:$0xff] %v649
      %658 = vst [vmem:[%s308 + $0x30] sm:$0x7] %v650
      %659 = vst [vmem:[%s308 + $0x38] sm:$0x7] %v651
      %s660 = smul.u32 2, %s22
      %p661 = scmp.lt.s32.totalorder %s21, 1
      %s662 = scalar_select %p661, %s21, 1
      %p663 = scmp.lt.s32.totalorder %s660, 1
      %s664 = scalar_select %p663, %s660, 1
      %s665 = smul.addr %s662, 8
      %s666 = sadd.s32 %s664, %s665
      %s667 = smul.addr %s666, 4
      %s668 = scalar_lea.vmem %s4, %s667
      %s669 = smul.u32 2, %s22
      %p670 = scmp.lt.s32.totalorder %s21, 1
      %s671 = scalar_select %p670, %s21, 1
      %p672 = scmp.lt.s32.totalorder %s669, 1
      %s673 = scalar_select %p672, %s669, 1
      %s674 = smul.addr %s671, 8
      %s675 = sadd.s32 %s673, %s674
      %s676 = smul.addr %s675, 8
      %s677 = scalar_lea.vmem %s5, %s676
      // Predicated region
      $region37: #{tpu_custom_call.1} parent=35 // pred_check
        %p678 = pneg %p145
      $region38: #{tpu_custom_call.1} parent=35 // pred_check_branch
        %680 = sbr.rel (%p678) target = $region40
      $region39: #{tpu_custom_call.1} parent=35 // pred_region
        %s681 = smul.u32 2, %s22
      $region40: #{tpu_custom_call.1} parent=35 // pred_fallthru
        _
      // Predicated region
      $region41: #{tpu_custom_call.1} parent=35 // pred_check
        %p682 = pneg %p173
      $region42: #{tpu_custom_call.1} parent=35 // pred_check_branch
        %684 = sbr.rel (%p682) target = $region44
      $region43: #{tpu_custom_call.1} parent=35 // pred_region
        %s685 = smul.u32 2, %s22
      $region44: #{tpu_custom_call.1} parent=35 // pred_fallthru
        _
    $region36: #{tpu_custom_call.1} parent=5 // pred_fallthru
      _
    %p686 = scmp.le.s32.totalorder 2, %s12
    // Predicated region
    $region45: #{tpu_custom_call.1} parent=5 // pred_check
      %p687 = pneg %p686
    $region46: #{tpu_custom_call.1} parent=5 // pred_check_branch
      %689 = sbr.rel (%p687) target = $region48
    $region47: #{tpu_custom_call.1} parent=5 // pred_region
      %s690 = ssub.s32 %s12, 2
      // Predicated region
      $region49: #{tpu_custom_call.1} parent=47 // pred_check
        %p691 = pneg %p151
      $region50: #{tpu_custom_call.1} parent=47 // pred_check_branch
        %693 = sbr.rel (%p691) target = $region52
      $region51: #{tpu_custom_call.1} parent=47 // pred_region
        %s694 = smul.u32 2, %s24
        %p695 = scmp.lt.s32.totalorder %s23, 1
        %s696 = scalar_select %p695, %s23, 1
        %p697 = scmp.lt.s32.totalorder %s694, 1
        %s698 = scalar_select %p697, %s694, 1
        %s699 = smul.addr %s696, 8
        %s700 = sadd.s32 %s698, %s699
        %s701 = smul.addr %s700, 4
        %s702 = scalar_lea.vmem %s4, %s701
      $region52: #{tpu_custom_call.1} parent=47 // pred_fallthru
        _
      // Predicated region
      $region53: #{tpu_custom_call.1} parent=47 // pred_check
        %p703 = pneg %p179
      $region54: #{tpu_custom_call.1} parent=47 // pred_check_branch
        %705 = sbr.rel (%p703) target = $region56
      $region55: #{tpu_custom_call.1} parent=47 // pred_region
        %s706 = smul.u32 2, %s24
        %p707 = scmp.lt.s32.totalorder %s23, 1
        %s708 = scalar_select %p707, %s23, 1
        %p709 = scmp.lt.s32.totalorder %s706, 1
        %s710 = scalar_select %p709, %s706, 1
        %s711 = smul.addr %s708, 8
        %s712 = sadd.s32 %s710, %s711
        %s713 = smul.addr %s712, 8
        %s714 = scalar_lea.vmem %s5, %s713
      $region56: #{tpu_custom_call.1} parent=47 // pred_fallthru
        _
    $region48: #{tpu_custom_call.1} parent=5 // pred_fallthru
      _
  $region6: #{tpu_custom_call.1} parent=0 // loop_footer
    %s16 = sadd.s32 1, %s12
  $region7: #{tpu_custom_call.1} parent=0 // loop_footer_branch
    %11 = sbr.rel target = $region3
  $region8: #{tpu_custom_call.1} parent=0 // loop_exit
    _

</llo_original>
